<compile_context>
chip_gen: v7x
topology: tpu7x:2x2x1
jax: 0.10.0
libtpu: 0.0.40
codegen_flags: <defaults>
</compile_context>

<pallas_src>
import jax
import jax.numpy as jnp
from jax.experimental import pallas as pl
from jax.experimental.pallas import tpu as pltpu  # noqa: F401  (TPU backend)


# ----------------------------------------------------------------------------
# Packed-constant slab layout (row offsets; lane width padded to 128)
# ----------------------------------------------------------------------------
_SLAB_W = 128
_R_W1, _N_W1 = 0, 8        # conv1 weights+bias     (8, 73)
_R_W2, _N_W2 = 8, 16       # conv2 weights+bias     (16, 73)
_R_WC, _N_WC = 24, 32      # folded classifier      (32, 65)
_R_S2, _N_S2 = 56, 64      # pool2+avgpool select   (64, 4)
_R_S1, _N_S1 = 120, 256    # pool1 select           (256, 64)
_SLAB_ROWS = 376


# ----------------------------------------------------------------------------
# In-kernel helpers (operate on values held in vregs)
# ----------------------------------------------------------------------------
def _shift_cols(x, s):
    """result[:, i] = x[:, i + s], zero-filled outside [0, ncols)."""
    if s == 0:
        return x
    c, n = x.shape
    fill = jnp.zeros((c, abs(s)), x.dtype)
    if s > 0:
        return jnp.concatenate([x[:, s:], fill], axis=1)
    return jnp.concatenate([fill, x[:, : n + s]], axis=1)


def _conv3x3_relu(x, w, width):
    """3x3 conv (stride 1, zero padding 1) + bias + ReLU on a (8, H*W) tile.

    x: (Cin=8, H*W) channels on sublanes, row-major spatial on lanes.
    w: (Cout, 73) with column index tap*8 + cin (tap = (dh+1)*3 + (dw+1)) and
       the bias in column 72.  The 9 taps are stacked along K and the bias is
       folded in via a ones-row, so the whole conv is ONE MXU matmul.
    """
    _, hw = x.shape
    colmod = jax.lax.broadcasted_iota(jnp.int32, (1, hw), 1) % width
    # Pre-masked sources so the intra-row wrap of a flat lane shift never leaks
    # (the h-boundary is already handled by the shift's zero fill).
    x_l = jnp.where(colmod == width - 1, 0.0, x)   # sources for dw == -1 taps
    x_r = jnp.where(colmod == 0, 0.0, x)           # sources for dw == +1 taps

    pieces = []
    for dh in (-1, 0, 1):
        for dw in (-1, 0, 1):
            src = x if dw == 0 else (x_l if dw < 0 else x_r)
            pieces.append(_shift_cols(src, dh * width + dw))
    pieces.append(jnp.ones((1, hw), jnp.float32))          # bias row
    stacked = jnp.concatenate(pieces, axis=0)              # (73, H*W)

    out = jnp.dot(w, stacked, preferred_element_type=jnp.float32)
    return jnp.maximum(out, 0.0)


def _maxpool2x2_windows(x, width):
    """max over each 2x2 window, evaluated at its top-left (anchor) position."""
    return jnp.maximum(
        jnp.maximum(x, _shift_cols(x, 1)),
        jnp.maximum(_shift_cols(x, width), _shift_cols(x, width + 1)),
    )


# ----------------------------------------------------------------------------
# Fused forward kernel
# ----------------------------------------------------------------------------
def _feature_extractor_kernel(x_ref, c_ref, o_ref):
    # Zero-pad input channels 3 -> 8 in VMEM (keeps every sublane concat
    # 8-aligned; avoids a separate XLA pad op before the kernel).
    x = jnp.concatenate([x_ref[...], jnp.zeros((5, 256), jnp.float32)], axis=0)

    # conv1 + ReLU (single K=73 stacked-tap matmul) on the 16x16 grid.
    a1 = _conv3x3_relu(x, c_ref[_R_W1:_R_W1 + _N_W1, 0:73], 16)          # (8, 256)

    # maxpool 2x2 -> compaction to the 8x8 grid via one selection matmul.
    p1 = jnp.dot(_maxpool2x2_windows(a1, 16),
                 c_ref[_R_S1:_R_S1 + _N_S1, 0:64],
                 preferred_element_type=jnp.float32)                      # (8, 64)

    # conv2 + ReLU on the 8x8 grid.
    a2 = _conv3x3_relu(p1, c_ref[_R_W2:_R_W2 + _N_W2, 0:73], 8)          # (16, 64)

    # maxpool 2x2 fused with the 2x2 adaptive average pool (single matmul).
    y = jnp.dot(_maxpool2x2_windows(a2, 8),
                c_ref[_R_S2:_R_S2 + _N_S2, 0:4],
                preferred_element_type=jnp.float32)                       # (16, 4)

    # Flatten + folded classifier (fc2 o fc1) as ONE matmul: stack the 4
    # spatial columns along K (plus a ones row for the folded bias).
    ystack = jnp.concatenate(
        [y[:, 0:1], y[:, 1:2], y[:, 2:3], y[:, 3:4],
         jnp.ones((1, 1), jnp.float32)], axis=0)                          # (65, 1)
    o_ref[...] = jnp.dot(c_ref[_R_WC:_R_WC + _N_WC, 0:65], ystack,
                         preferred_element_type=jnp.float32)              # (32, 1)


def feature_extractor_forward(image_nchw, prepped):
    """image_nchw: (1, 3, 16, 16) float32 -> (32,) float32."""
    assert image_nchw.shape == (1, 3, 16, 16)
    # NCHW -> (channels, H*W): contiguous reshape (free bitcast, no pad op).
    x = image_nchw.astype(jnp.float32).reshape(3, 256)
    slab = prepped["slab"]

    out = pl.pallas_call(
        _feature_extractor_kernel,
        out_shape=jax.ShapeDtypeStruct((32, 1), jnp.float32),
        in_specs=[pl.BlockSpec(x.shape, lambda *_: (0, 0)),
                  pl.BlockSpec(slab.shape, lambda *_: (0, 0))],
        out_specs=pl.BlockSpec((32, 1), lambda *_: (0, 0)),
    )(x, slab)
    return out.reshape(-1)


# ----------------------------------------------------------------------------
# One-time parameter preparation (pure JAX, outside the hot path)
# ----------------------------------------------------------------------------
def prep_params(params):
    f32 = jnp.float32

    # Conv weights -> (Cout, tap*8 + cin), tap = kh*3 + kw; conv1 cin padded to 8.
    w1 = jnp.transpose(params["conv1_w"].astype(f32), (0, 2, 3, 1))       # (8,3,3,3)
    w1 = jnp.pad(w1, ((0, 0), (0, 0), (0, 0), (0, 5))).reshape(8, 72)
    w1 = jnp.concatenate([w1, params["conv1_b"].astype(f32).reshape(8, 1)], axis=1)

    w2 = jnp.transpose(params["conv2_w"].astype(f32), (0, 2, 3, 1)).reshape(16, 72)
    w2 = jnp.concatenate([w2, params["conv2_b"].astype(f32).reshape(16, 1)], axis=1)

    # maxpool-1 compaction (16x16 -> 8x8): one-hot anchor selection.
    o = jnp.arange(64)
    anchors = (2 * (o // 8)) * 16 + 2 * (o % 8)
    s1 = (jnp.arange(256)[:, None] == anchors[None, :]).astype(f32)       # (256, 64)

    # maxpool-2 compaction fused with the 2x2 adaptive average pool.
    i = jnp.arange(64)
    h8, w8 = i // 8, i % 8
    is_anchor = (h8 % 2 == 0) & (w8 % 2 == 0)
    t_of_i = (h8 // 4) * 2 + (w8 // 4)
    s2 = jnp.where(is_anchor[:, None] &
                   (t_of_i[:, None] == jnp.arange(4)[None, :]), 0.25, 0.0).astype(f32)

    # Fold the two activation-free Linears into one affine map and permute it
    # so the kernel's (t-major, c-minor) K-stack reproduces the NCHW flatten.
    wf = (params["fc1_w"] @ params["fc2_w"]).astype(f32)                  # (64, 32)
    bf = (params["fc1_b"] @ params["fc2_w"] + params["fc2_b"]).astype(f32)
    wcls = jnp.transpose(wf.reshape(16, 4, 32), (2, 1, 0)).reshape(32, 64)
    wcls = jnp.concatenate([wcls, bf.reshape(32, 1)], axis=1)             # (32, 65)

    def pad_w(a):
        return jnp.pad(a, ((0, 0), (0, _SLAB_W - a.shape[1])))

    slab = jnp.concatenate(
        [pad_w(w1), pad_w(w2), pad_w(wcls), pad_w(s2), pad_w(s1)], axis=0)
    assert slab.shape == (_SLAB_ROWS, _SLAB_W)
    return {"slab": slab}


def init_params(key):
    ks = jax.random.split(key, 8)
    s = 0.1
    return {
        "conv1_w": s * jax.random.normal(ks[0], (8, 3, 3, 3), jnp.float32),
        "conv1_b": s * jax.random.normal(ks[1], (8,), jnp.float32),
        "conv2_w": s * jax.random.normal(ks[2], (16, 8, 3, 3), jnp.float32),
        "conv2_b": s * jax.random.normal(ks[3], (16,), jnp.float32),
        # 16 channels * 2 * 2 spatial = 64 flattened features
        "fc1_w": s * jax.random.normal(ks[4], (64, 32), jnp.float32),
        "fc1_b": s * jax.random.normal(ks[5], (32,), jnp.float32),
        "fc2_w": s * jax.random.normal(ks[6], (32, 32), jnp.float32),
        "fc2_b": s * jax.random.normal(ks[7], (32,), jnp.float32),
    }


# ----------------------------------------------------------------------------
# Pure-JAX reference (mirrors the PyTorch module) for a correctness check
# ----------------------------------------------------------------------------
def _reference_forward(image_nchw, params):
    hi = jax.lax.Precision.HIGHEST
    x = image_nchw.astype(jnp.float32)
    x = jax.lax.conv_general_dilated(
        x, params["conv1_w"], (1, 1), "SAME",
        dimension_numbers=("NCHW", "OIHW", "NCHW"), precision=hi)
    x = jax.nn.relu(x + params["conv1_b"][None, :, None, None])
    x = jax.lax.reduce_window(x, -jnp.inf, jax.lax.max,
                              (1, 1, 2, 2), (1, 1, 2, 2), "VALID")
    x = jax.lax.conv_general_dilated(
        x, params["conv2_w"], (1, 1), "SAME",
        dimension_numbers=("NCHW", "OIHW", "NCHW"), precision=hi)
    x = jax.nn.relu(x + params["conv2_b"][None, :, None, None])
    x = jax.lax.reduce_window(x, -jnp.inf, jax.lax.max,
                              (1, 1, 2, 2), (1, 1, 2, 2), "VALID")
    x = jax.lax.reduce_window(x, 0.0, jax.lax.add,
                              (1, 1, 2, 2), (1, 1, 2, 2), "VALID") * 0.25
    f = x.reshape(-1)                               # flatten(start_dim=0), NCHW
    h = f @ params["fc1_w"] + params["fc1_b"]
    return h @ params["fc2_w"] + params["fc2_b"]    # no activation in between


if __name__ == "__main__":
    key = jax.random.PRNGKey(0)
    k_img, k_par = jax.random.split(key)
    # Flatten(start_dim=0) feeding a Linear implies a single image (batch = 1).
    image = jax.random.normal(k_img, (1, 3, 16, 16), jnp.float32)   # NCHW
    params = init_params(k_par)
    prepped = prep_params(params)          # one-time offline weight folding

    fwd = jax.jit(feature_extractor_forward)
    out = jax.block_until_ready(fwd(image, prepped))

    assert out.shape == (32,) and out.dtype == jnp.float32
    assert bool(jnp.all(jnp.isfinite(out)))
    ref = _reference_forward(image, params)
    assert bool(jnp.allclose(out, ref, rtol=1e-3, atol=1e-3)), (out, ref)
    print("KERNEL_OK")
</pallas_src>

<mosaic_0001>
module attributes {stable_mosaic.version = 11 : i64} {
  func.func @_feature_extractor_kernel(%arg0: memref<3x256xf32, #tpu.memory_space<vmem>>, %arg1: memref<376x128xf32, #tpu.memory_space<vmem>>, %arg2: memref<32x1xf32, #tpu.memory_space<vmem>>) attributes {dimension_semantics = [], scalar_prefetch = 0 : i64, scratch_operands = 0 : i64, tpu.core_type = #tpu.core_type<tc>} {
    %c0 = arith.constant 0 : index
    %c0_0 = arith.constant 0 : index
    %0 = vector.load %arg0[%c0, %c0_0] : memref<3x256xf32, #tpu.memory_space<vmem>>, vector<3x256xf32>
    %cst = arith.constant 0.000000e+00 : f32
    %1 = vector.broadcast %cst : f32 to vector<5x256xf32>
    %2 = tpu.concatenate %0, %1 in 0 : vector<3x256xf32>, vector<5x256xf32> -> vector<8x256xf32>
    %c0_1 = arith.constant 0 : index
    %c0_2 = arith.constant 0 : index
    %3 = vector.load %arg1[%c0_1, %c0_2] : memref<376x128xf32, #tpu.memory_space<vmem>>, vector<8x73xf32>
    %4 = tpu.iota {dimensions = array<i32: 1>} : vector<1x256xi32>
    %c16_i32 = arith.constant 16 : i32
    %c0_i32 = arith.constant 0 : i32
    %5 = arith.cmpi eq, %c16_i32, %c0_i32 : i32
    %c1_i32 = arith.constant 1 : i32
    %6 = arith.select %5, %c1_i32, %c16_i32 : i32
    %7 = vector.broadcast %6 : i32 to vector<1x256xi32>
    %8 = arith.remsi %4, %7 : vector<1x256xi32>
    %c0_i32_3 = arith.constant 0 : i32
    %9 = vector.broadcast %c0_i32_3 : i32 to vector<1x256xi32>
    %10 = arith.cmpi ne, %8, %9 : vector<1x256xi32>
    %c0_i32_4 = arith.constant 0 : i32
    %11 = vector.broadcast %c0_i32_4 : i32 to vector<1x256xi32>
    %12 = arith.cmpi slt, %8, %11 : vector<1x256xi32>
    %c0_i32_5 = arith.constant 0 : i32
    %13 = arith.cmpi slt, %6, %c0_i32_5 : i32
    %14 = vector.broadcast %13 : i1 to vector<1x256xi1>
    %15 = vector.broadcast %14 : vector<1x256xi1> to vector<1x256xi1>
    %16 = arith.xori %12, %15 : vector<1x256xi1>
    %17 = arith.andi %16, %10 : vector<1x256xi1>
    %18 = vector.broadcast %6 : i32 to vector<1x256xi32>
    %19 = arith.addi %8, %18 : vector<1x256xi32>
    %20 = arith.select %17, %19, %8 : vector<1x256xi1>, vector<1x256xi32>
    %c15_i32 = arith.constant 15 : i32
    %21 = vector.broadcast %c15_i32 : i32 to vector<1x256xi32>
    %22 = arith.cmpi eq, %20, %21 : vector<1x256xi32>
    %cst_6 = arith.constant 0.000000e+00 : f32
    %23 = vector.shape_cast %22 : vector<1x256xi1> to vector<1x256xi1>
    %24 = vector.broadcast %23 : vector<1x256xi1> to vector<8x256xi1>
    %25 = vector.broadcast %cst_6 : f32 to vector<8x256xf32>
    %26 = arith.select %24, %25, %2 : vector<8x256xi1>, vector<8x256xf32>
    %c0_i32_7 = arith.constant 0 : i32
    %27 = vector.broadcast %c0_i32_7 : i32 to vector<1x256xi32>
    %28 = arith.cmpi eq, %20, %27 : vector<1x256xi32>
    %cst_8 = arith.constant 0.000000e+00 : f32
    %29 = vector.shape_cast %28 : vector<1x256xi1> to vector<1x256xi1>
    %30 = vector.broadcast %29 : vector<1x256xi1> to vector<8x256xi1>
    %31 = vector.broadcast %cst_8 : f32 to vector<8x256xf32>
    %32 = arith.select %30, %31, %2 : vector<8x256xi1>, vector<8x256xf32>
    %cst_9 = arith.constant 0.000000e+00 : f32
    %33 = vector.broadcast %cst_9 : f32 to vector<8x17xf32>
    %34 = vector.extract_strided_slice %26 {offsets = [0, 0], sizes = [8, 239], strides = [1, 1]} : vector<8x256xf32> to vector<8x239xf32>
    %35 = tpu.concatenate %33, %34 in 1 : vector<8x17xf32>, vector<8x239xf32> -> vector<8x256xf32>
    %cst_10 = arith.constant 0.000000e+00 : f32
    %36 = vector.broadcast %cst_10 : f32 to vector<8x16xf32>
    %37 = vector.extract_strided_slice %2 {offsets = [0, 0], sizes = [8, 240], strides = [1, 1]} : vector<8x256xf32> to vector<8x240xf32>
    %38 = tpu.concatenate %36, %37 in 1 : vector<8x16xf32>, vector<8x240xf32> -> vector<8x256xf32>
    %cst_11 = arith.constant 0.000000e+00 : f32
    %39 = vector.broadcast %cst_11 : f32 to vector<8x15xf32>
    %40 = vector.extract_strided_slice %32 {offsets = [0, 0], sizes = [8, 241], strides = [1, 1]} : vector<8x256xf32> to vector<8x241xf32>
    %41 = tpu.concatenate %39, %40 in 1 : vector<8x15xf32>, vector<8x241xf32> -> vector<8x256xf32>
    %cst_12 = arith.constant 0.000000e+00 : f32
    %42 = vector.broadcast %cst_12 : f32 to vector<8x1xf32>
    %43 = vector.extract_strided_slice %26 {offsets = [0, 0], sizes = [8, 255], strides = [1, 1]} : vector<8x256xf32> to vector<8x255xf32>
    %44 = tpu.concatenate %42, %43 in 1 : vector<8x1xf32>, vector<8x255xf32> -> vector<8x256xf32>
    %cst_13 = arith.constant 0.000000e+00 : f32
    %45 = vector.broadcast %cst_13 : f32 to vector<8x1xf32>
    %46 = vector.extract_strided_slice %32 {offsets = [0, 1], sizes = [8, 255], strides = [1, 1]} : vector<8x256xf32> to vector<8x255xf32>
    %47 = tpu.concatenate %46, %45 in 1 : vector<8x255xf32>, vector<8x1xf32> -> vector<8x256xf32>
    %cst_14 = arith.constant 0.000000e+00 : f32
    %48 = vector.broadcast %cst_14 : f32 to vector<8x15xf32>
    %49 = vector.extract_strided_slice %26 {offsets = [0, 15], sizes = [8, 241], strides = [1, 1]} : vector<8x256xf32> to vector<8x241xf32>
    %50 = tpu.concatenate %49, %48 in 1 : vector<8x241xf32>, vector<8x15xf32> -> vector<8x256xf32>
    %cst_15 = arith.constant 0.000000e+00 : f32
    %51 = vector.broadcast %cst_15 : f32 to vector<8x16xf32>
    %52 = vector.extract_strided_slice %2 {offsets = [0, 16], sizes = [8, 240], strides = [1, 1]} : vector<8x256xf32> to vector<8x240xf32>
    %53 = tpu.concatenate %52, %51 in 1 : vector<8x240xf32>, vector<8x16xf32> -> vector<8x256xf32>
    %cst_16 = arith.constant 0.000000e+00 : f32
    %54 = vector.broadcast %cst_16 : f32 to vector<8x17xf32>
    %55 = vector.extract_strided_slice %32 {offsets = [0, 17], sizes = [8, 239], strides = [1, 1]} : vector<8x256xf32> to vector<8x239xf32>
    %56 = tpu.concatenate %55, %54 in 1 : vector<8x239xf32>, vector<8x17xf32> -> vector<8x256xf32>
    %cst_17 = arith.constant 1.000000e+00 : f32
    %57 = vector.broadcast %cst_17 : f32 to vector<1x256xf32>
    %58 = tpu.concatenate %35, %38, %41, %44, %2, %47, %50, %53, %56, %57 in 0 : vector<8x256xf32>, vector<8x256xf32>, vector<8x256xf32>, vector<8x256xf32>, vector<8x256xf32>, vector<8x256xf32>, vector<8x256xf32>, vector<8x256xf32>, vector<8x256xf32>, vector<1x256xf32> -> vector<73x256xf32>
    %cst_18 = arith.constant dense<0.000000e+00> : vector<8x256xf32>
    %59 = tpu.matmul %3, %58, %cst_18 {dimension_numbers = #tpu.dot_dimension_numbers<[1], [0], [0], [1], [0, 0, 1, 1], [], []>} : vector<8x73xf32>, vector<73x256xf32>, vector<8x256xf32> -> vector<8x256xf32>
    %cst_19 = arith.constant 0.000000e+00 : f32
    %60 = vector.broadcast %cst_19 : f32 to vector<8x256xf32>
    %61 = arith.maximumf %59, %60 : vector<8x256xf32>
    %cst_20 = arith.constant 0.000000e+00 : f32
    %62 = vector.broadcast %cst_20 : f32 to vector<8x1xf32>
    %63 = vector.extract_strided_slice %61 {offsets = [0, 1], sizes = [8, 255], strides = [1, 1]} : vector<8x256xf32> to vector<8x255xf32>
    %64 = tpu.concatenate %63, %62 in 1 : vector<8x255xf32>, vector<8x1xf32> -> vector<8x256xf32>
    %65 = arith.maximumf %61, %64 : vector<8x256xf32>
    %cst_21 = arith.constant 0.000000e+00 : f32
    %66 = vector.broadcast %cst_21 : f32 to vector<8x16xf32>
    %67 = vector.extract_strided_slice %61 {offsets = [0, 16], sizes = [8, 240], strides = [1, 1]} : vector<8x256xf32> to vector<8x240xf32>
    %68 = tpu.concatenate %67, %66 in 1 : vector<8x240xf32>, vector<8x16xf32> -> vector<8x256xf32>
    %cst_22 = arith.constant 0.000000e+00 : f32
    %69 = vector.broadcast %cst_22 : f32 to vector<8x17xf32>
    %70 = vector.extract_strided_slice %61 {offsets = [0, 17], sizes = [8, 239], strides = [1, 1]} : vector<8x256xf32> to vector<8x239xf32>
    %71 = tpu.concatenate %70, %69 in 1 : vector<8x239xf32>, vector<8x17xf32> -> vector<8x256xf32>
    %72 = arith.maximumf %68, %71 : vector<8x256xf32>
    %73 = arith.maximumf %65, %72 : vector<8x256xf32>
    %c120 = arith.constant 120 : index
    %c0_23 = arith.constant 0 : index
    %74 = vector.load %arg1[%c120, %c0_23] : memref<376x128xf32, #tpu.memory_space<vmem>>, vector<256x64xf32>
    %cst_24 = arith.constant dense<0.000000e+00> : vector<8x64xf32>
    %75 = tpu.matmul %73, %74, %cst_24 {dimension_numbers = #tpu.dot_dimension_numbers<[1], [0], [0], [1], [0, 0, 1, 1], [], []>} : vector<8x256xf32>, vector<256x64xf32>, vector<8x64xf32> -> vector<8x64xf32>
    %c8 = arith.constant 8 : index
    %c0_25 = arith.constant 0 : index
    %76 = vector.load %arg1[%c8, %c0_25] : memref<376x128xf32, #tpu.memory_space<vmem>>, vector<16x73xf32>
    %77 = tpu.iota {dimensions = array<i32: 1>} : vector<1x64xi32>
    %c8_i32 = arith.constant 8 : i32
    %c0_i32_26 = arith.constant 0 : i32
    %78 = arith.cmpi eq, %c8_i32, %c0_i32_26 : i32
    %c1_i32_27 = arith.constant 1 : i32
    %79 = arith.select %78, %c1_i32_27, %c8_i32 : i32
    %80 = vector.broadcast %79 : i32 to vector<1x64xi32>
    %81 = arith.remsi %77, %80 : vector<1x64xi32>
    %c0_i32_28 = arith.constant 0 : i32
    %82 = vector.broadcast %c0_i32_28 : i32 to vector<1x64xi32>
    %83 = arith.cmpi ne, %81, %82 : vector<1x64xi32>
    %c0_i32_29 = arith.constant 0 : i32
    %84 = vector.broadcast %c0_i32_29 : i32 to vector<1x64xi32>
    %85 = arith.cmpi slt, %81, %84 : vector<1x64xi32>
    %c0_i32_30 = arith.constant 0 : i32
    %86 = arith.cmpi slt, %79, %c0_i32_30 : i32
    %87 = vector.broadcast %86 : i1 to vector<1x64xi1>
    %88 = vector.broadcast %87 : vector<1x64xi1> to vector<1x64xi1>
    %89 = arith.xori %85, %88 : vector<1x64xi1>
    %90 = arith.andi %89, %83 : vector<1x64xi1>
    %91 = vector.broadcast %79 : i32 to vector<1x64xi32>
    %92 = arith.addi %81, %91 : vector<1x64xi32>
    %93 = arith.select %90, %92, %81 : vector<1x64xi1>, vector<1x64xi32>
    %c7_i32 = arith.constant 7 : i32
    %94 = vector.broadcast %c7_i32 : i32 to vector<1x64xi32>
    %95 = arith.cmpi eq, %93, %94 : vector<1x64xi32>
    %cst_31 = arith.constant 0.000000e+00 : f32
    %96 = vector.shape_cast %95 : vector<1x64xi1> to vector<1x64xi1>
    %97 = vector.broadcast %96 : vector<1x64xi1> to vector<8x64xi1>
    %98 = vector.broadcast %cst_31 : f32 to vector<8x64xf32>
    %99 = arith.select %97, %98, %75 : vector<8x64xi1>, vector<8x64xf32>
    %c0_i32_32 = arith.constant 0 : i32
    %100 = vector.broadcast %c0_i32_32 : i32 to vector<1x64xi32>
    %101 = arith.cmpi eq, %93, %100 : vector<1x64xi32>
    %cst_33 = arith.constant 0.000000e+00 : f32
    %102 = vector.shape_cast %101 : vector<1x64xi1> to vector<1x64xi1>
    %103 = vector.broadcast %102 : vector<1x64xi1> to vector<8x64xi1>
    %104 = vector.broadcast %cst_33 : f32 to vector<8x64xf32>
    %105 = arith.select %103, %104, %75 : vector<8x64xi1>, vector<8x64xf32>
    %cst_34 = arith.constant 0.000000e+00 : f32
    %106 = vector.broadcast %cst_34 : f32 to vector<8x9xf32>
    %107 = vector.extract_strided_slice %99 {offsets = [0, 0], sizes = [8, 55], strides = [1, 1]} : vector<8x64xf32> to vector<8x55xf32>
    %108 = tpu.concatenate %106, %107 in 1 : vector<8x9xf32>, vector<8x55xf32> -> vector<8x64xf32>
    %cst_35 = arith.constant 0.000000e+00 : f32
    %109 = vector.broadcast %cst_35 : f32 to vector<8x8xf32>
    %110 = vector.extract_strided_slice %75 {offsets = [0, 0], sizes = [8, 56], strides = [1, 1]} : vector<8x64xf32> to vector<8x56xf32>
    %111 = tpu.concatenate %109, %110 in 1 : vector<8x8xf32>, vector<8x56xf32> -> vector<8x64xf32>
    %cst_36 = arith.constant 0.000000e+00 : f32
    %112 = vector.broadcast %cst_36 : f32 to vector<8x7xf32>
    %113 = vector.extract_strided_slice %105 {offsets = [0, 0], sizes = [8, 57], strides = [1, 1]} : vector<8x64xf32> to vector<8x57xf32>
    %114 = tpu.concatenate %112, %113 in 1 : vector<8x7xf32>, vector<8x57xf32> -> vector<8x64xf32>
    %cst_37 = arith.constant 0.000000e+00 : f32
    %115 = vector.broadcast %cst_37 : f32 to vector<8x1xf32>
    %116 = vector.extract_strided_slice %99 {offsets = [0, 0], sizes = [8, 63], strides = [1, 1]} : vector<8x64xf32> to vector<8x63xf32>
    %117 = tpu.concatenate %115, %116 in 1 : vector<8x1xf32>, vector<8x63xf32> -> vector<8x64xf32>
    %cst_38 = arith.constant 0.000000e+00 : f32
    %118 = vector.broadcast %cst_38 : f32 to vector<8x1xf32>
    %119 = vector.extract_strided_slice %105 {offsets = [0, 1], sizes = [8, 63], strides = [1, 1]} : vector<8x64xf32> to vector<8x63xf32>
    %120 = tpu.concatenate %119, %118 in 1 : vector<8x63xf32>, vector<8x1xf32> -> vector<8x64xf32>
    %cst_39 = arith.constant 0.000000e+00 : f32
    %121 = vector.broadcast %cst_39 : f32 to vector<8x7xf32>
    %122 = vector.extract_strided_slice %99 {offsets = [0, 7], sizes = [8, 57], strides = [1, 1]} : vector<8x64xf32> to vector<8x57xf32>
    %123 = tpu.concatenate %122, %121 in 1 : vector<8x57xf32>, vector<8x7xf32> -> vector<8x64xf32>
    %cst_40 = arith.constant 0.000000e+00 : f32
    %124 = vector.broadcast %cst_40 : f32 to vector<8x8xf32>
    %125 = vector.extract_strided_slice %75 {offsets = [0, 8], sizes = [8, 56], strides = [1, 1]} : vector<8x64xf32> to vector<8x56xf32>
    %126 = tpu.concatenate %125, %124 in 1 : vector<8x56xf32>, vector<8x8xf32> -> vector<8x64xf32>
    %cst_41 = arith.constant 0.000000e+00 : f32
    %127 = vector.broadcast %cst_41 : f32 to vector<8x9xf32>
    %128 = vector.extract_strided_slice %105 {offsets = [0, 9], sizes = [8, 55], strides = [1, 1]} : vector<8x64xf32> to vector<8x55xf32>
    %129 = tpu.concatenate %128, %127 in 1 : vector<8x55xf32>, vector<8x9xf32> -> vector<8x64xf32>
    %cst_42 = arith.constant 1.000000e+00 : f32
    %130 = vector.broadcast %cst_42 : f32 to vector<1x64xf32>
    %131 = tpu.concatenate %108, %111, %114, %117, %75, %120, %123, %126, %129, %130 in 0 : vector<8x64xf32>, vector<8x64xf32>, vector<8x64xf32>, vector<8x64xf32>, vector<8x64xf32>, vector<8x64xf32>, vector<8x64xf32>, vector<8x64xf32>, vector<8x64xf32>, vector<1x64xf32> -> vector<73x64xf32>
    %cst_43 = arith.constant dense<0.000000e+00> : vector<16x64xf32>
    %132 = tpu.matmul %76, %131, %cst_43 {dimension_numbers = #tpu.dot_dimension_numbers<[1], [0], [0], [1], [0, 0, 1, 1], [], []>} : vector<16x73xf32>, vector<73x64xf32>, vector<16x64xf32> -> vector<16x64xf32>
    %cst_44 = arith.constant 0.000000e+00 : f32
    %133 = vector.broadcast %cst_44 : f32 to vector<16x64xf32>
    %134 = arith.maximumf %132, %133 : vector<16x64xf32>
    %cst_45 = arith.constant 0.000000e+00 : f32
    %135 = vector.broadcast %cst_45 : f32 to vector<16x1xf32>
    %136 = vector.extract_strided_slice %134 {offsets = [0, 1], sizes = [16, 63], strides = [1, 1]} : vector<16x64xf32> to vector<16x63xf32>
    %137 = tpu.concatenate %136, %135 in 1 : vector<16x63xf32>, vector<16x1xf32> -> vector<16x64xf32>
    %138 = arith.maximumf %134, %137 : vector<16x64xf32>
    %cst_46 = arith.constant 0.000000e+00 : f32
    %139 = vector.broadcast %cst_46 : f32 to vector<16x8xf32>
    %140 = vector.extract_strided_slice %134 {offsets = [0, 8], sizes = [16, 56], strides = [1, 1]} : vector<16x64xf32> to vector<16x56xf32>
    %141 = tpu.concatenate %140, %139 in 1 : vector<16x56xf32>, vector<16x8xf32> -> vector<16x64xf32>
    %cst_47 = arith.constant 0.000000e+00 : f32
    %142 = vector.broadcast %cst_47 : f32 to vector<16x9xf32>
    %143 = vector.extract_strided_slice %134 {offsets = [0, 9], sizes = [16, 55], strides = [1, 1]} : vector<16x64xf32> to vector<16x55xf32>
    %144 = tpu.concatenate %143, %142 in 1 : vector<16x55xf32>, vector<16x9xf32> -> vector<16x64xf32>
    %145 = arith.maximumf %141, %144 : vector<16x64xf32>
    %146 = arith.maximumf %138, %145 : vector<16x64xf32>
    %c56 = arith.constant 56 : index
    %c0_48 = arith.constant 0 : index
    %147 = vector.load %arg1[%c56, %c0_48] : memref<376x128xf32, #tpu.memory_space<vmem>>, vector<64x4xf32>
    %cst_49 = arith.constant dense<0.000000e+00> : vector<16x4xf32>
    %148 = tpu.matmul %146, %147, %cst_49 {dimension_numbers = #tpu.dot_dimension_numbers<[1], [0], [0], [1], [0, 0, 1, 1], [], []>} : vector<16x64xf32>, vector<64x4xf32>, vector<16x4xf32> -> vector<16x4xf32>
    %149 = vector.extract_strided_slice %148 {offsets = [0, 0], sizes = [16, 1], strides = [1, 1]} : vector<16x4xf32> to vector<16x1xf32>
    %150 = vector.extract_strided_slice %148 {offsets = [0, 1], sizes = [16, 1], strides = [1, 1]} : vector<16x4xf32> to vector<16x1xf32>
    %151 = vector.extract_strided_slice %148 {offsets = [0, 2], sizes = [16, 1], strides = [1, 1]} : vector<16x4xf32> to vector<16x1xf32>
    %152 = vector.extract_strided_slice %148 {offsets = [0, 3], sizes = [16, 1], strides = [1, 1]} : vector<16x4xf32> to vector<16x1xf32>
    %cst_50 = arith.constant 1.000000e+00 : f32
    %153 = vector.broadcast %cst_50 : f32 to vector<1x1xf32>
    %154 = tpu.concatenate %149, %150, %151, %152, %153 in 0 : vector<16x1xf32>, vector<16x1xf32>, vector<16x1xf32>, vector<16x1xf32>, vector<1x1xf32> -> vector<65x1xf32>
    %c24 = arith.constant 24 : index
    %c0_51 = arith.constant 0 : index
    %155 = vector.load %arg1[%c24, %c0_51] : memref<376x128xf32, #tpu.memory_space<vmem>>, vector<32x65xf32>
    %cst_52 = arith.constant dense<0.000000e+00> : vector<32x1xf32>
    %156 = tpu.matmul %155, %154, %cst_52 {dimension_numbers = #tpu.dot_dimension_numbers<[1], [0], [0], [1], [0, 0, 1, 1], [], []>} : vector<32x65xf32>, vector<65x1xf32>, vector<32x1xf32> -> vector<32x1xf32>
    %c0_53 = arith.constant 0 : index
    %c0_54 = arith.constant 0 : index
    %157 = vector.load %arg2[%c0_53, %c0_54] : memref<32x1xf32, #tpu.memory_space<vmem>>, vector<32x1xf32>
    tpu.vector_store %arg2[%c0_53, %c0_54], %156 {strides = array<i32>} : memref<32x1xf32, #tpu.memory_space<vmem>>, vector<32x1xf32>,
    return
  }
}

</mosaic_0001>

<llo_original>
// kernel: feature_extractor_forward.1
$region0: #{feature_extractor_forward.1}
  #allocation0 [shape = 'u32[]', space=smem, size = 0x4, offset = 0x4, fixed_abs, tag = 'smem constant byte address 0x4 - core index']
  #allocation1 [shape = 'u32[144,128]{1,0:T(1,128)}', space=vmem, size = 0x12000, scoped, tag = 'internal scratch']
  %s0 = inlined_call_operand.vmem [shape: f32[3,256], index: 0, kind: input, shape index: {}]
  %s1 = inlined_call_operand.hbm [shape: f32[376,128], index: 1, kind: input, shape index: {}]
  %s2 = inlined_call_operand.vmem [shape: f32[32,1], index: 2, kind: output, shape index: {}]
  %s3 = sld [smem:[#allocation0]]
  $region22: #{feature_extractor_forward.1} parent=0
    _
  %s5 = ssub.s32 1, %s3
  %s6 = scalar_select 0, %s5, %s3
  $region1: #{feature_extractor_forward.1} parent=0
    #allocation2 [shape = 'u8[192512]{0}', space=vmem, size = 0x2f000, scoped, tag = 'input window, operand 1, single buffered']
    #allocation3 [shape = 's32[1]{0}', space=sflag, size = 0x4, scoped, tag = 'scoped memory for feature_extractor_forward.1']
    %7 = vsyncpa [#allocation3], 0
    // Predicated region
    $region2: #{feature_extractor_forward.1} parent=1 // pred_check
      _
    $region3: #{feature_extractor_forward.1} parent=1 // pred_check_branch
      %9 = sbr.rel (0) target = $region5
    $region4: #{feature_extractor_forward.1} parent=1 // pred_region
      _
    $region5: #{feature_extractor_forward.1} parent=1 // pred_fallthru
      _
    // Predicated region
    $region6: #{feature_extractor_forward.1} parent=1 // pred_check
      _
    $region7: #{feature_extractor_forward.1} parent=1 // pred_check_branch
      %11 = sbr.rel (0) target = $region9
    $region8: #{feature_extractor_forward.1} parent=1 // pred_region
      %s13 = ssub.s32 6016, 6016
      %14 = vsyncadd [#allocation3], %s13
      %s15 = sshll.u32 [#allocation2], 4
      %s16 = int_to_ptr.vmem [resolvable:$true] %s15
      %21 = dma.hbm_to_vmem [thread:$0]  %s1, 6016, %s16, [#allocation3], 128, 128, 8
    $region9: #{feature_extractor_forward.1} parent=1 // pred_fallthru
      _
    // Predicated region
    $region10: #{feature_extractor_forward.1} parent=1 // pred_check
      _
    $region11: #{feature_extractor_forward.1} parent=1 // pred_check_branch
      %23 = sbr.rel (0) target = $region13
    $region12: #{feature_extractor_forward.1} parent=1 // pred_region
      %24 = dma.done [#allocation3], 6016
    $region13: #{feature_extractor_forward.1} parent=1 // pred_fallthru
      _
    %v25 = vld [vmem:[%s0] sm:$0x77]
    %v27 = vcombine.high %v25, %v25
    %vm29 = vcmask 1042432
    %v30 = vsel %vm29, %v25, 0.0
    %v31 = vsel %vm29, %v27, 0.0
    %v32 = vld [vmem:[#allocation2] sm:$0xff]
    %v33 = vlaneseq
    %v34 = vand.u32 %v33, 127
    %v35 = vadd.s32 %v34, 128
    %vm36 = vcmp.lt.s32.totalorder %v34, 0
    %v37 = vsub.s32 0, %v34
    %v38 = vsel %vm36, %v37, %v34
    %v39 = vshrl.u32 %v38, 4
    %v40 = vand.u32 %v38, 15
    %v41 = vsub.s32 0, %v40
    %v42 = vsel %vm36, %v41, %v40
    %vm43 = vcmp.lt.s32.totalorder %v35, 0
    %v44 = vsub.s32 0, %v35
    %v45 = vsel %vm43, %v44, %v35
    %v46 = vshrl.u32 %v45, 4
    %v47 = vand.u32 %v45, 15
    %v48 = vsub.s32 0, %v47
    %v49 = vsel %vm43, %v48, %v47
    %vm50 = vcmp.ne.s32.totalorder %v42, 0
    %vm51 = vcmp.ne.s32.totalorder %v49, 0
    %vm52 = vcmp.lt.s32.totalorder %v42, 0
    %vm53 = vcmp.lt.s32.totalorder %v49, 0
    %vm54 = vmand %vm52, %vm50
    %vm55 = vmand %vm53, %vm51
    %v56 = vadd.s32 %v42, 16
    %v57 = vadd.s32 %v49, 16
    %v58 = vsel %vm54, %v56, %v42
    %v59 = vsel %vm55, %v57, %v49
    %vm60 = vcmp.eq.s32.totalorder %v58, 15
    %vm61 = vcmp.eq.s32.totalorder %v59, 15
    %v62 = vsel %vm60, 1, 0
    %v63 = vsel %vm61, 1, 0
    %vm64 = vcmp.eq.s32.totalorder %v62, 1
    %vm65 = vcmp.eq.s32.totalorder %v63, 1
    %v66 = vsel %vm64, 0.0, %v30
    %v67 = vsel %vm65, 0.0, %v31
    %vm68 = vcmp.eq.s32.totalorder %v58, 0
    %vm69 = vcmp.eq.s32.totalorder %v59, 0
    %v70 = vsel %vm68, 1, 0
    %v71 = vsel %vm69, 1, 0
    %vm72 = vcmp.eq.s32.totalorder %v70, 1
    %vm73 = vcmp.eq.s32.totalorder %v71, 1
    %v74 = vsel %vm72, 0.0, %v30
    %v75 = vsel %vm73, 0.0, %v31
    %78 = vrot.lane.b32.xlu0 %v66, 17
    %v79 = vpop.permute.xlu0 %78
    %80 = vrot.lane.b32.xlu0 %v67, 17
    %v81 = vpop.permute.xlu0 %80
    %vm82 = vcmask 138240
    %v83 = vsel %vm82, %v79, %v81
    %v86 = vsel %vm82, 0.0, %v79
    %89 = vrot.lane.b32.xlu0 %v30, 16
    %v90 = vpop.permute.xlu0 %89
    %91 = vrot.lane.b32.xlu0 %v31, 16
    %v92 = vpop.permute.xlu0 %91
    %vm93 = vcmask 130048
    %v94 = vsel %vm93, %v90, %v92
    %v97 = vsel %vm93, 0.0, %v90
    %100 = vrot.lane.b32.xlu0 %v74, 15
    %v101 = vpop.permute.xlu0 %100
    %102 = vrot.lane.b32.xlu0 %v75, 15
    %v103 = vpop.permute.xlu0 %102
    %vm104 = vcmask 121856
    %v105 = vsel %vm104, %v101, %v103
    %v108 = vsel %vm104, 0.0, %v101
    %109 = vrot.lane.b32.xlu0 %v66, 1
    %v110 = vpop.permute.xlu0 %109
    %111 = vrot.lane.b32.xlu0 %v67, 1
    %v112 = vpop.permute.xlu0 %111
    %vm113 = vcmask 7168
    %v114 = vsel %vm113, %v110, %v112
    %v117 = vsel %vm113, 0.0, %v110
    %118 = vrot.lane.b32.xlu0 %v74, 127
    %v119 = vpop.permute.xlu0 %118
    %120 = vrot.lane.b32.xlu0 %v75, 127
    %v121 = vpop.permute.xlu0 %120
    %vm122 = vcmask 1039360
    %v123 = vsel %vm122, %v119, %v121
    %v126 = vsel %vm122, %v121, 0.0
    %127 = vrot.lane.b32.xlu0 %v66, 113
    %v128 = vpop.permute.xlu0 %127
    %129 = vrot.lane.b32.xlu0 %v67, 113
    %v130 = vpop.permute.xlu0 %129
    %vm131 = vcmask 924672
    %v132 = vsel %vm131, %v128, %v130
    %v135 = vsel %vm131, %v130, 0.0
    %136 = vrot.lane.b32.xlu0 %v30, 112
    %v137 = vpop.permute.xlu0 %136
    %138 = vrot.lane.b32.xlu0 %v31, 112
    %v139 = vpop.permute.xlu0 %138
    %vm140 = vcmask 916480
    %v141 = vsel %vm140, %v137, %v139
    %v144 = vsel %vm140, %v139, 0.0
    %145 = vrot.lane.b32.xlu0 %v74, 111
    %v146 = vpop.permute.xlu0 %145
    %147 = vrot.lane.b32.xlu0 %v75, 111
    %v148 = vpop.permute.xlu0 %147
    %vm149 = vcmask 908288
    %v150 = vsel %vm149, %v146, %v148
    %v153 = vsel %vm149, %v148, 0.0
    %vm154 = vcmask 596992
    %v156 = vsel %vm154, %v32, 0
    %vm158 = vcmask 1040384
    %v160 = vsel %vm158, 1.0, 0
    %162 = vmatprep.subr.mxu0 %v83
    %163 = vmatpush1.msra.mxu0 %v86
    %164 = vmatprep.subr.mxu0 %v94
    %165 = vmatpush1.msra.mxu0 %v97
    %166 = vmatprep.subr.mxu0 %v105
    %167 = vmatpush1.msra.mxu0 %v108
    %168 = vmatprep.subr.mxu0 %v114
    %169 = vmatpush1.msra.mxu0 %v117
    %170 = vmatprep.subr.mxu0 %v31
    %171 = vmatpush1.msra.mxu0 %v30
    %172 = vmatprep.subr.mxu0 %v126
    %173 = vmatpush1.msra.mxu0 %v123
    %174 = vmatprep.subr.mxu0 %v135
    %175 = vmatpush1.msra.mxu0 %v132
    %176 = vmatprep.subr.mxu0 %v144
    %177 = vmatpush1.msra.mxu0 %v141
    %178 = vmatprep.subr.mxu0 %v153
    %179 = vmatpush1.msra.mxu0 %v150
    %180 = vmatprep.subr.mxu0 %v160
    %181 = vmatpush1.msra.mxu0 %v160
    %182 = vmatprep.subr.mxu0 0.0
    %183 = vmatpush1.msra.mxu0 0.0
    %184 = vmatprep.subr.mxu0 0.0
    %185 = vmatpush1.msra.mxu0 0.0
    %186 = vmatprep.subr.mxu0 0.0
    %187 = vmatpush1.msra.mxu0 0.0
    %188 = vmatprep.subr.mxu0 0.0
    %189 = vmatpush1.msra.mxu0 0.0
    %190 = vmatprep.subr.mxu0 0.0
    %191 = vmatpush1.msra.mxu0 0.0
    %192 = vmatprep.subr.mxu0 0.0
    %193 = vmatpush1.msra.mxu0 0.0
    %194 = vmatprep.subr.mxu0 0.0
    %195 = vmatpush1.msra.mxu0 0.0
    %196 = vmatprep.subr.mxu0 0.0
    %197 = vmatpush1.msra.mxu0 0.0
    %198 = vmatprep.subr.mxu0 0.0
    %199 = vmatpush1.msra.mxu0 0.0
    %200 = vmatprep.subr.mxu0 0.0
    %201 = vmatpush1.msra.mxu0 0.0
    %202 = vmatprep.subr.mxu0 0.0
    %203 = vmatpush1.msra.mxu0 0.0
    %204 = vmatprep.subr.mxu0 0.0
    %205 = vmatpush1.msra.mxu0 0.0
    %206 = vmatprep.subr.mxu0 0.0
    %207 = vmatpush1.msra.mxu0 0.0
    %208 = vmatprep.subr.mxu0 0.0
    %209 = vmatpush1.msra.mxu0 0.0
    %210 = vmatprep.subr.mxu0 0.0
    %211 = vmatpush1.msra.mxu0 0.0
    %212 = vmatprep.subr.mxu0 0.0
    %213 = vmatpush1.msra.mxu0 0.0
    %214 = vmatprep.subr.mxu0 0.0
    %215 = vmatpush1.msra.mxu0 0.0
    %216 = vmatprep.subr.mxu0 0.0
    %217 = vmatpush1.msra.mxu0 0.0
    %218 = vmatprep.subr.mxu0 0.0
    %219 = vmatpush1.msra.mxu0 0.0
    %220 = vmatprep.subr.mxu0 0.0
    %221 = vmatpush1.msra.mxu0 0.0
    %222 = vmatprep.subr.mxu0 0.0
    %223 = vmatpush1.msra.mxu0 0.0
    %224 = vmatprep.subr.mxu0 0.0
    %225 = vmatpush1.msra.mxu0 0.0
    %226 = vmatprep.mubr.f32.mxu0 0.0
    %227 = vmatmul.mubr.f32.gmra.mrb[0].mxu0 %v156
    %v228 = vpop.f32.mrb[0].mxu0
    %v229 = vadd.f32 0.0, %v228
    %v230 = vpop.f32.mrb[0].mxu0
    %v231 = vadd.f32 0.0, %v230
    %232 = vdwg.mxu0
    %v233 = vmax.f32 %v229, 0.0
    %v234 = vmax.f32 %v231, 0.0
    %237 = vrot.lane.b32.xlu0 %v233, 127
    %v238 = vpop.permute.xlu0 %237
    %239 = vrot.lane.b32.xlu0 %v234, 127
    %v240 = vpop.permute.xlu0 %239
    %v241 = vsel %vm122, %v238, %v240
    %v244 = vsel %vm122, %v240, 0.0
    %v245 = vmax.f32 %v233, %v241
    %v246 = vmax.f32 %v234, %v244
    %247 = vrot.lane.b32.xlu0 %v233, 112
    %v248 = vpop.permute.xlu0 %247
    %249 = vrot.lane.b32.xlu0 %v234, 112
    %v250 = vpop.permute.xlu0 %249
    %v251 = vsel %vm140, %v248, %v250
    %v254 = vsel %vm140, %v250, 0.0
    %255 = vrot.lane.b32.xlu0 %v233, 111
    %v256 = vpop.permute.xlu0 %255
    %257 = vrot.lane.b32.xlu0 %v234, 111
    %v258 = vpop.permute.xlu0 %257
    %v259 = vsel %vm149, %v256, %v258
    %v262 = vsel %vm149, %v258, 0.0
    %v263 = vmax.f32 %v251, %v259
    %v264 = vmax.f32 %v254, %v262
    %v265 = vmax.f32 %v245, %v263
    %v266 = vmax.f32 %v246, %v264
    %v267 = vld [vmem:[#allocation2 + $0x78] sm:$0xff]
    %v268 = vld [vmem:[#allocation2 + $0x80] sm:$0xff]
    %v269 = vld [vmem:[#allocation2 + $0x88] sm:$0xff]
    %v270 = vld [vmem:[#allocation2 + $0x90] sm:$0xff]
    %v271 = vld [vmem:[#allocation2 + $0x98] sm:$0xff]
    %v272 = vld [vmem:[#allocation2 + $0xa0] sm:$0xff]
    %v273 = vld [vmem:[#allocation2 + $0xa8] sm:$0xff]
    %v274 = vld [vmem:[#allocation2 + $0xb0] sm:$0xff]
    %v275 = vld [vmem:[#allocation2 + $0xb8] sm:$0xff]
    %v276 = vld [vmem:[#allocation2 + $0xc0] sm:$0xff]
    %v277 = vld [vmem:[#allocation2 + $0xc8] sm:$0xff]
    %v278 = vld [vmem:[#allocation2 + $0xd0] sm:$0xff]
    %v279 = vld [vmem:[#allocation2 + $0xd8] sm:$0xff]
    %v280 = vld [vmem:[#allocation2 + $0xe0] sm:$0xff]
    %v281 = vld [vmem:[#allocation2 + $0xe8] sm:$0xff]
    %v282 = vld [vmem:[#allocation2 + $0xf0] sm:$0xff]
    %v283 = vld [vmem:[#allocation2 + $0xf8] sm:$0xff]
    %v284 = vld [vmem:[#allocation2 + $0x100] sm:$0xff]
    %v285 = vld [vmem:[#allocation2 + $0x108] sm:$0xff]
    %v286 = vld [vmem:[#allocation2 + $0x110] sm:$0xff]
    %v287 = vld [vmem:[#allocation2 + $0x118] sm:$0xff]
    %v288 = vld [vmem:[#allocation2 + $0x120] sm:$0xff]
    %v289 = vld [vmem:[#allocation2 + $0x128] sm:$0xff]
    %v290 = vld [vmem:[#allocation2 + $0x130] sm:$0xff]
    %v291 = vld [vmem:[#allocation2 + $0x138] sm:$0xff]
    %v292 = vld [vmem:[#allocation2 + $0x140] sm:$0xff]
    %v293 = vld [vmem:[#allocation2 + $0x148] sm:$0xff]
    %v294 = vld [vmem:[#allocation2 + $0x150] sm:$0xff]
    %v295 = vld [vmem:[#allocation2 + $0x158] sm:$0xff]
    %v296 = vld [vmem:[#allocation2 + $0x160] sm:$0xff]
    %v297 = vld [vmem:[#allocation2 + $0x168] sm:$0xff]
    %v298 = vld [vmem:[#allocation2 + $0x170] sm:$0xff]
    %299 = vmatprep.subr.mxu0 0.0
    %300 = vmatpush1.msra.mxu0 %v267
    %301 = vmatprep.subr.mxu0 0.0
    %302 = vmatpush1.msra.mxu0 %v268
    %303 = vmatprep.subr.mxu0 0.0
    %304 = vmatpush1.msra.mxu0 %v269
    %305 = vmatprep.subr.mxu0 0.0
    %306 = vmatpush1.msra.mxu0 %v270
    %307 = vmatprep.subr.mxu0 0.0
    %308 = vmatpush1.msra.mxu0 %v271
    %309 = vmatprep.subr.mxu0 0.0
    %310 = vmatpush1.msra.mxu0 %v272
    %311 = vmatprep.subr.mxu0 0.0
    %312 = vmatpush1.msra.mxu0 %v273
    %313 = vmatprep.subr.mxu0 0.0
    %314 = vmatpush1.msra.mxu0 %v274
    %315 = vmatprep.subr.mxu0 0.0
    %316 = vmatpush1.msra.mxu0 %v275
    %317 = vmatprep.subr.mxu0 0.0
    %318 = vmatpush1.msra.mxu0 %v276
    %319 = vmatprep.subr.mxu0 0.0
    %320 = vmatpush1.msra.mxu0 %v277
    %321 = vmatprep.subr.mxu0 0.0
    %322 = vmatpush1.msra.mxu0 %v278
    %323 = vmatprep.subr.mxu0 0.0
    %324 = vmatpush1.msra.mxu0 %v279
    %325 = vmatprep.subr.mxu0 0.0
    %326 = vmatpush1.msra.mxu0 %v280
    %327 = vmatprep.subr.mxu0 0.0
    %328 = vmatpush1.msra.mxu0 %v281
    %329 = vmatprep.subr.mxu0 0.0
    %330 = vmatpush1.msra.mxu0 %v282
    %331 = vmatprep.subr.mxu0 0.0
    %332 = vmatpush1.msra.mxu0 %v283
    %333 = vmatprep.subr.mxu0 0.0
    %334 = vmatpush1.msra.mxu0 %v284
    %335 = vmatprep.subr.mxu0 0.0
    %336 = vmatpush1.msra.mxu0 %v285
    %337 = vmatprep.subr.mxu0 0.0
    %338 = vmatpush1.msra.mxu0 %v286
    %339 = vmatprep.subr.mxu0 0.0
    %340 = vmatpush1.msra.mxu0 %v287
    %341 = vmatprep.subr.mxu0 0.0
    %342 = vmatpush1.msra.mxu0 %v288
    %343 = vmatprep.subr.mxu0 0.0
    %344 = vmatpush1.msra.mxu0 %v289
    %345 = vmatprep.subr.mxu0 0.0
    %346 = vmatpush1.msra.mxu0 %v290
    %347 = vmatprep.subr.mxu0 0.0
    %348 = vmatpush1.msra.mxu0 %v291
    %349 = vmatprep.subr.mxu0 0.0
    %350 = vmatpush1.msra.mxu0 %v292
    %351 = vmatprep.subr.mxu0 0.0
    %352 = vmatpush1.msra.mxu0 %v293
    %353 = vmatprep.subr.mxu0 0.0
    %354 = vmatpush1.msra.mxu0 %v294
    %355 = vmatprep.subr.mxu0 0.0
    %356 = vmatpush1.msra.mxu0 %v295
    %357 = vmatprep.subr.mxu0 0.0
    %358 = vmatpush1.msra.mxu0 %v296
    %359 = vmatprep.subr.mxu0 0.0
    %360 = vmatpush1.msra.mxu0 %v297
    %361 = vmatprep.subr.mxu0 0.0
    %362 = vmatpush1.msra.mxu0 %v298
    %363 = vmatprep.mubr.f32.mxu0 %v266
    %364 = vmatmul.mubr.f32.gmra.mrb[0].mxu0 %v265
    %v365 = vpop.f32.mrb[0].mxu0
    %v366 = vadd.f32 0.0, %v365
    %v367 = vpop.f32.mrb[0].mxu0
    %368 = vdwg.mxu0
    %v369 = vld [vmem:[#allocation2 + $0x8] sm:$0xff]
    %v370 = vld [vmem:[#allocation2 + $0x10] sm:$0xff]
    %vm371 = vcmp.lt.s32.totalorder %v34, 0
    %v372 = vsub.s32 0, %v34
    %v373 = vsel %vm371, %v372, %v34
    %v374 = vshrl.u32 %v373, 3
    %v375 = vand.u32 %v373, 7
    %v376 = vsub.s32 0, %v375
    %v377 = vsel %vm371, %v376, %v375
    %vm378 = vcmp.ne.s32.totalorder %v377, 0
    %vm379 = vcmp.lt.s32.totalorder %v377, 0
    %vm380 = vmand %vm379, %vm378
    %v381 = vadd.s32 %v377, 8
    %v382 = vsel %vm380, %v381, %v377
    %vm383 = vcmp.eq.s32.totalorder %v382, 7
    %v384 = vsel %vm383, 1, 0
    %vm385 = vcmp.eq.s32.totalorder %v384, 1
    %v386 = vsel %vm385, 0.0, %v366
    %vm387 = vcmp.eq.s32.totalorder %v382, 0
    %v388 = vsel %vm387, 1, 0
    %vm389 = vcmp.eq.s32.totalorder %v388, 1
    %v390 = vsel %vm389, 0.0, %v366
    %392 = vrot.lane.b32.xlu0 %v386, 9
    %v393 = vpop.permute.xlu0 %392
    %vm395 = vcmask 72704
    %v396 = vsel %vm395, 0.0, %v393
    %398 = vrot.lane.b32.xlu0 %v366, 8
    %v399 = vpop.permute.xlu0 %398
    %vm401 = vcmask 64512
    %v402 = vsel %vm401, 0.0, %v399
    %404 = vrot.lane.b32.xlu0 %v390, 7
    %v405 = vpop.permute.xlu0 %404
    %vm407 = vcmask 56320
    %v408 = vsel %vm407, 0.0, %v405
    %409 = vrot.lane.b32.xlu0 %v386, 1
    %v410 = vpop.permute.xlu0 %409
    %v412 = vsel %vm113, 0.0, %v410
    %413 = vrot.lane.b32.xlu0 %v390, 127
    %v414 = vpop.permute.xlu0 %413
    %vm416 = vcmask 515072
    %v417 = vsel %vm416, %v414, 0.0
    %418 = vrot.lane.b32.xlu0 %v386, 121
    %v419 = vpop.permute.xlu0 %418
    %vm421 = vcmask 465920
    %v422 = vsel %vm421, %v419, 0.0
    %423 = vrot.lane.b32.xlu0 %v366, 120
    %v424 = vpop.permute.xlu0 %423
    %vm426 = vcmask 457728
    %v427 = vsel %vm426, %v424, 0.0
    %428 = vrot.lane.b32.xlu0 %v390, 119
    %v429 = vpop.permute.xlu0 %428
    %vm431 = vcmask 449536
    %v432 = vsel %vm431, %v429, 0.0
    %v434 = vsel %vm154, %v369, 0
    %v437 = vsel %vm154, %v370, 0
    %439 = vmatprep.subr.mxu0 0.0
    %440 = vmatpush1.msra.mxu0 %v396
    %441 = vmatprep.subr.mxu0 0.0
    %442 = vmatpush1.msra.mxu0 %v402
    %443 = vmatprep.subr.mxu0 0.0
    %444 = vmatpush1.msra.mxu0 %v408
    %445 = vmatprep.subr.mxu0 0.0
    %446 = vmatpush1.msra.mxu0 %v412
    %447 = vmatprep.subr.mxu0 0.0
    %448 = vmatpush1.msra.mxu0 %v366
    %449 = vmatprep.subr.mxu0 0.0
    %450 = vmatpush1.msra.mxu0 %v417
    %451 = vmatprep.subr.mxu0 0.0
    %452 = vmatpush1.msra.mxu0 %v422
    %453 = vmatprep.subr.mxu0 0.0
    %454 = vmatpush1.msra.mxu0 %v427
    %455 = vmatprep.subr.mxu0 0.0
    %456 = vmatpush1.msra.mxu0 %v432
    %457 = vmatprep.subr.mxu0 0.0
    %458 = vmatpush1.msra.mxu0 %v160
    %459 = vmatprep.subr.mxu0 0.0
    %460 = vmatpush1.msra.mxu0 0.0
    %461 = vmatprep.subr.mxu0 0.0
    %462 = vmatpush1.msra.mxu0 0.0
    %463 = vmatprep.subr.mxu0 0.0
    %464 = vmatpush1.msra.mxu0 0.0
    %465 = vmatprep.subr.mxu0 0.0
    %466 = vmatpush1.msra.mxu0 0.0
    %467 = vmatprep.subr.mxu0 0.0
    %468 = vmatpush1.msra.mxu0 0.0
    %469 = vmatprep.subr.mxu0 0.0
    %470 = vmatpush1.msra.mxu0 0.0
    %471 = vmatprep.subr.mxu0 0.0
    %472 = vmatpush1.msra.mxu0 0.0
    %473 = vmatprep.subr.mxu0 0.0
    %474 = vmatpush1.msra.mxu0 0.0
    %475 = vmatprep.subr.mxu0 0.0
    %476 = vmatpush1.msra.mxu0 0.0
    %477 = vmatprep.subr.mxu0 0.0
    %478 = vmatpush1.msra.mxu0 0.0
    %479 = vmatprep.subr.mxu0 0.0
    %480 = vmatpush1.msra.mxu0 0.0
    %481 = vmatprep.subr.mxu0 0.0
    %482 = vmatpush1.msra.mxu0 0.0
    %483 = vmatprep.subr.mxu0 0.0
    %484 = vmatpush1.msra.mxu0 0.0
    %485 = vmatprep.subr.mxu0 0.0
    %486 = vmatpush1.msra.mxu0 0.0
    %487 = vmatprep.subr.mxu0 0.0
    %488 = vmatpush1.msra.mxu0 0.0
    %489 = vmatprep.subr.mxu0 0.0
    %490 = vmatpush1.msra.mxu0 0.0
    %491 = vmatprep.subr.mxu0 0.0
    %492 = vmatpush1.msra.mxu0 0.0
    %493 = vmatprep.subr.mxu0 0.0
    %494 = vmatpush1.msra.mxu0 0.0
    %495 = vmatprep.subr.mxu0 0.0
    %496 = vmatpush1.msra.mxu0 0.0
    %497 = vmatprep.subr.mxu0 0.0
    %498 = vmatpush1.msra.mxu0 0.0
    %499 = vmatprep.subr.mxu0 0.0
    %500 = vmatpush1.msra.mxu0 0.0
    %501 = vmatprep.subr.mxu0 0.0
    %502 = vmatpush1.msra.mxu0 0.0
    %503 = vmatprep.mubr.f32.mxu0 0.0
    %504 = vmatmul.mubr.f32.gmra.mrb[0].mxu0 %v434
    %v505 = vpop.f32.mrb[0].mxu0
    %v506 = vadd.f32 0.0, %v505
    %v507 = vpop.f32.mrb[0].mxu0
    %508 = vmatprep.mubr.f32.mxu0 0.0
    %509 = vmatmul.mubr.f32.gmra.mrb[0].mxu0 %v437
    %v510 = vpop.f32.mrb[0].mxu0
    %v511 = vadd.f32 0.0, %v510
    %v512 = vpop.f32.mrb[0].mxu0
    %513 = vdwg.mxu0
    %v514 = vmax.f32 %v506, 0.0
    %v515 = vmax.f32 %v511, 0.0
    %518 = vrot.lane.b32.xlu0 %v514, 127
    %v519 = vpop.permute.xlu0 %518
    %520 = vrot.lane.b32.xlu0 %v515, 127
    %v521 = vpop.permute.xlu0 %520
    %v524 = vsel %vm416, %v519, 0.0
    %v525 = vsel %vm416, %v521, 0.0
    %v526 = vmax.f32 %v514, %v524
    %v527 = vmax.f32 %v515, %v525
    %528 = vrot.lane.b32.xlu0 %v514, 120
    %v529 = vpop.permute.xlu0 %528
    %530 = vrot.lane.b32.xlu0 %v515, 120
    %v531 = vpop.permute.xlu0 %530
    %v534 = vsel %vm426, %v529, 0.0
    %v535 = vsel %vm426, %v531, 0.0
    %536 = vrot.lane.b32.xlu0 %v514, 119
    %v537 = vpop.permute.xlu0 %536
    %538 = vrot.lane.b32.xlu0 %v515, 119
    %v539 = vpop.permute.xlu0 %538
    %v542 = vsel %vm431, %v537, 0.0
    %v543 = vsel %vm431, %v539, 0.0
    %v544 = vmax.f32 %v534, %v542
    %v545 = vmax.f32 %v535, %v543
    %v546 = vmax.f32 %v526, %v544
    %v547 = vmax.f32 %v527, %v545
    %v548 = vld [vmem:[#allocation2 + $0x38] sm:$0xff]
    %v549 = vld [vmem:[#allocation2 + $0x40] sm:$0xff]
    %v550 = vld [vmem:[#allocation2 + $0x48] sm:$0xff]
    %v551 = vld [vmem:[#allocation2 + $0x50] sm:$0xff]
    %v552 = vld [vmem:[#allocation2 + $0x58] sm:$0xff]
    %v553 = vld [vmem:[#allocation2 + $0x60] sm:$0xff]
    %v554 = vld [vmem:[#allocation2 + $0x68] sm:$0xff]
    %v555 = vld [vmem:[#allocation2 + $0x70] sm:$0xff]
    %vm556 = vcmask 523264
    %v558 = vsel %vm556, %v546, 0
    %v561 = vsel %vm556, %v547, 0
    %563 = vmatprep.subr.mxu0 0.0
    %564 = vmatpush1.msra.mxu0 %v548
    %565 = vmatprep.subr.mxu0 0.0
    %566 = vmatpush1.msra.mxu0 %v549
    %567 = vmatprep.subr.mxu0 0.0
    %568 = vmatpush1.msra.mxu0 %v550
    %569 = vmatprep.subr.mxu0 0.0
    %570 = vmatpush1.msra.mxu0 %v551
    %571 = vmatprep.subr.mxu0 0.0
    %572 = vmatpush1.msra.mxu0 %v552
    %573 = vmatprep.subr.mxu0 0.0
    %574 = vmatpush1.msra.mxu0 %v553
    %575 = vmatprep.subr.mxu0 0.0
    %576 = vmatpush1.msra.mxu0 %v554
    %577 = vmatprep.subr.mxu0 0.0
    %578 = vmatpush1.msra.mxu0 %v555
    %579 = vmatprep.subr.mxu0 0.0
    %580 = vmatpush1.msra.mxu0 0.0
    %581 = vmatprep.subr.mxu0 0.0
    %582 = vmatpush1.msra.mxu0 0.0
    %583 = vmatprep.subr.mxu0 0.0
    %584 = vmatpush1.msra.mxu0 0.0
    %585 = vmatprep.subr.mxu0 0.0
    %586 = vmatpush1.msra.mxu0 0.0
    %587 = vmatprep.subr.mxu0 0.0
    %588 = vmatpush1.msra.mxu0 0.0
    %589 = vmatprep.subr.mxu0 0.0
    %590 = vmatpush1.msra.mxu0 0.0
    %591 = vmatprep.subr.mxu0 0.0
    %592 = vmatpush1.msra.mxu0 0.0
    %593 = vmatprep.subr.mxu0 0.0
    %594 = vmatpush1.msra.mxu0 0.0
    %595 = vmatprep.subr.mxu0 0.0
    %596 = vmatpush1.msra.mxu0 0.0
    %597 = vmatprep.subr.mxu0 0.0
    %598 = vmatpush1.msra.mxu0 0.0
    %599 = vmatprep.subr.mxu0 0.0
    %600 = vmatpush1.msra.mxu0 0.0
    %601 = vmatprep.subr.mxu0 0.0
    %602 = vmatpush1.msra.mxu0 0.0
    %603 = vmatprep.subr.mxu0 0.0
    %604 = vmatpush1.msra.mxu0 0.0
    %605 = vmatprep.subr.mxu0 0.0
    %606 = vmatpush1.msra.mxu0 0.0
    %607 = vmatprep.subr.mxu0 0.0
    %608 = vmatpush1.msra.mxu0 0.0
    %609 = vmatprep.subr.mxu0 0.0
    %610 = vmatpush1.msra.mxu0 0.0
    %611 = vmatprep.subr.mxu0 0.0
    %612 = vmatpush1.msra.mxu0 0.0
    %613 = vmatprep.subr.mxu0 0.0
    %614 = vmatpush1.msra.mxu0 0.0
    %615 = vmatprep.subr.mxu0 0.0
    %616 = vmatpush1.msra.mxu0 0.0
    %617 = vmatprep.subr.mxu0 0.0
    %618 = vmatpush1.msra.mxu0 0.0
    %619 = vmatprep.subr.mxu0 0.0
    %620 = vmatpush1.msra.mxu0 0.0
    %621 = vmatprep.subr.mxu0 0.0
    %622 = vmatpush1.msra.mxu0 0.0
    %623 = vmatprep.subr.mxu0 0.0
    %624 = vmatpush1.msra.mxu0 0.0
    %625 = vmatprep.subr.mxu0 0.0
    %626 = vmatpush1.msra.mxu0 0.0
    %627 = vmatprep.mubr.f32.mxu0 0.0
    %628 = vmatmul.mubr.f32.gmra.mrb[0].mxu0 %v558
    %v629 = vpop.f32.mrb[0].mxu0
    %v630 = vadd.f32 0.0, %v629
    %v631 = vpop.f32.mrb[0].mxu0
    %632 = vmatprep.mubr.f32.mxu0 0.0
    %633 = vmatmul.mubr.f32.gmra.mrb[0].mxu0 %v561
    %v634 = vpop.f32.mrb[0].mxu0
    %v635 = vadd.f32 0.0, %v634
    %v636 = vpop.f32.mrb[0].mxu0
    %637 = vdwg.mxu0
    %640 = vrot.lane.b32.xlu0 %v630, 127
    %v641 = vpop.permute.xlu0 %640
    %642 = vrot.lane.b32.xlu0 %v635, 127
    %v643 = vpop.permute.xlu0 %642
    %646 = vrot.lane.b32.xlu0 %v630, 126
    %v647 = vpop.permute.xlu0 %646
    %648 = vrot.lane.b32.xlu0 %v635, 126
    %v649 = vpop.permute.xlu0 %648
    %652 = vrot.lane.b32.xlu0 %v630, 125
    %v653 = vpop.permute.xlu0 %652
    %654 = vrot.lane.b32.xlu0 %v635, 125
    %v655 = vpop.permute.xlu0 %654
    %v658 = vld [vmem:[#allocation2 + $0x18] sm:$0xff]
    %v659 = vld [vmem:[#allocation2 + $0x20] sm:$0xff]
    %v660 = vld [vmem:[#allocation2 + $0x28] sm:$0xff]
    %v661 = vld [vmem:[#allocation2 + $0x30] sm:$0xff]
    %vm662 = vcmask 531456
    %v664 = vsel %vm662, %v658, 0
    %v667 = vsel %vm662, %v659, 0
    %v670 = vsel %vm662, %v660, 0
    %v673 = vsel %vm662, %v661, 0
    %675 = vmatprep.subr.mxu0 0.0
    %676 = vmatpush1.msra.mxu0 %v630
    %677 = vmatprep.subr.mxu0 0.0
    %678 = vmatpush1.msra.mxu0 %v635
    %679 = vmatprep.subr.mxu0 0.0
    %680 = vmatpush1.msra.mxu0 %v641
    %681 = vmatprep.subr.mxu0 0.0
    %682 = vmatpush1.msra.mxu0 %v643
    %683 = vmatprep.subr.mxu0 0.0
    %684 = vmatpush1.msra.mxu0 %v647
    %685 = vmatprep.subr.mxu0 0.0
    %686 = vmatpush1.msra.mxu0 %v649
    %687 = vmatprep.subr.mxu0 0.0
    %688 = vmatpush1.msra.mxu0 %v653
    %689 = vmatprep.subr.mxu0 0.0
    %690 = vmatpush1.msra.mxu0 %v655
    %691 = vmatprep.subr.mxu0 0.0
    %692 = vmatpush1.msra.mxu0 %v160
    %693 = vmatprep.subr.mxu0 0.0
    %694 = vmatpush1.msra.mxu0 0.0
    %695 = vmatprep.subr.mxu0 0.0
    %696 = vmatpush1.msra.mxu0 0.0
    %697 = vmatprep.subr.mxu0 0.0
    %698 = vmatpush1.msra.mxu0 0.0
    %699 = vmatprep.subr.mxu0 0.0
    %700 = vmatpush1.msra.mxu0 0.0
    %701 = vmatprep.subr.mxu0 0.0
    %702 = vmatpush1.msra.mxu0 0.0
    %703 = vmatprep.subr.mxu0 0.0
    %704 = vmatpush1.msra.mxu0 0.0
    %705 = vmatprep.subr.mxu0 0.0
    %706 = vmatpush1.msra.mxu0 0.0
    %707 = vmatprep.subr.mxu0 0.0
    %708 = vmatpush1.msra.mxu0 0.0
    %709 = vmatprep.subr.mxu0 0.0
    %710 = vmatpush1.msra.mxu0 0.0
    %711 = vmatprep.subr.mxu0 0.0
    %712 = vmatpush1.msra.mxu0 0.0
    %713 = vmatprep.subr.mxu0 0.0
    %714 = vmatpush1.msra.mxu0 0.0
    %715 = vmatprep.subr.mxu0 0.0
    %716 = vmatpush1.msra.mxu0 0.0
    %717 = vmatprep.subr.mxu0 0.0
    %718 = vmatpush1.msra.mxu0 0.0
    %719 = vmatprep.subr.mxu0 0.0
    %720 = vmatpush1.msra.mxu0 0.0
    %721 = vmatprep.subr.mxu0 0.0
    %722 = vmatpush1.msra.mxu0 0.0
    %723 = vmatprep.subr.mxu0 0.0
    %724 = vmatpush1.msra.mxu0 0.0
    %725 = vmatprep.subr.mxu0 0.0
    %726 = vmatpush1.msra.mxu0 0.0
    %727 = vmatprep.subr.mxu0 0.0
    %728 = vmatpush1.msra.mxu0 0.0
    %729 = vmatprep.subr.mxu0 0.0
    %730 = vmatpush1.msra.mxu0 0.0
    %731 = vmatprep.subr.mxu0 0.0
    %732 = vmatpush1.msra.mxu0 0.0
    %733 = vmatprep.subr.mxu0 0.0
    %734 = vmatpush1.msra.mxu0 0.0
    %735 = vmatprep.subr.mxu0 0.0
    %736 = vmatpush1.msra.mxu0 0.0
    %737 = vmatprep.subr.mxu0 0.0
    %738 = vmatpush1.msra.mxu0 0.0
    %739 = vmatprep.mubr.f32.mxu0 0.0
    %740 = vmatmul.mubr.f32.gmra.mrb[0].mxu0 %v664
    %v741 = vpop.f32.mrb[0].mxu0
    %v742 = vadd.f32 0.0, %v741
    %v743 = vpop.f32.mrb[0].mxu0
    %744 = vmatprep.mubr.f32.mxu0 0.0
    %745 = vmatmul.mubr.f32.gmra.mrb[0].mxu0 %v667
    %v746 = vpop.f32.mrb[0].mxu0
    %v747 = vadd.f32 0.0, %v746
    %v748 = vpop.f32.mrb[0].mxu0
    %749 = vmatprep.mubr.f32.mxu0 0.0
    %750 = vmatmul.mubr.f32.gmra.mrb[0].mxu0 %v670
    %v751 = vpop.f32.mrb[0].mxu0
    %v752 = vadd.f32 0.0, %v751
    %v753 = vpop.f32.mrb[0].mxu0
    %754 = vmatprep.mubr.f32.mxu0 0.0
    %755 = vmatmul.mubr.f32.gmra.mrb[0].mxu0 %v673
    %v756 = vpop.f32.mrb[0].mxu0
    %v757 = vadd.f32 0.0, %v756
    %v758 = vpop.f32.mrb[0].mxu0
    %759 = vdwg.mxu0
    %760 = vst.msk [vmem:[%s2] sm:$0xff] %vm113, %v742
    %761 = vst.msk [vmem:[%s2 + $0x8] sm:$0xff] %vm113, %v747
    %762 = vst.msk [vmem:[%s2 + $0x10] sm:$0xff] %vm113, %v752
    %763 = vst.msk [vmem:[%s2 + $0x18] sm:$0xff] %vm113, %v757
    // Predicated region
    $region14: #{feature_extractor_forward.1} parent=1 // pred_check
      _
    $region15: #{feature_extractor_forward.1} parent=1 // pred_check_branch
      %765 = sbr.rel (0) target = $region17
    $region16: #{feature_extractor_forward.1} parent=1 // pred_region
      _
    $region17: #{feature_extractor_forward.1} parent=1 // pred_fallthru
      _
    // Predicated region
    $region18: #{feature_extractor_forward.1} parent=1 // pred_check
      _
    $region19: #{feature_extractor_forward.1} parent=1 // pred_check_branch
      %767 = sbr.rel (0) target = $region21
    $region20: #{feature_extractor_forward.1} parent=1 // pred_region
      _
    $region21: #{feature_extractor_forward.1} parent=1 // pred_fallthru
      _
    %768 = vsyncpa [#allocation3], 1

</llo_original>
